<compile_context>
chip_gen: v6e
topology: v6e:2x2x1
jax: 0.10.0
libtpu: 0.0.40
codegen_flags: <defaults>
</compile_context>

<pallas_src>
import functools
import math

import jax
import jax.numpy as jnp
from jax.experimental import pallas as pl
from jax.experimental.pallas import tpu as pltpu


def _round_up(x, m):
    return ((x + m - 1) // m) * m


def _bce_dice_kernel(x_ref, t_ref, bce_ref, inter_ref, psum_ref, tsum_ref,
                     *, tile_rows, lanes, f_actual, needs_mask):
    k = pl.program_id(1)                       # row-tile index ("arbitrary" axis)

    x = x_ref[0].astype(jnp.float32)           # (tile_rows, lanes)
    t = t_ref[0].astype(jnp.float32)

    # Stable BCE-with-logits and sigmoid from ONE exp per element:
    #   e = exp(-|x|), d = 1 + e
    #   bce  = max(x, 0) - x*t + log(d)
    #   p    = sigmoid(x) = 1/d (x >= 0) else e/d
    e = jnp.exp(-jnp.abs(x))
    d = 1.0 + e
    bce_elem = jnp.maximum(x, 0.0) - x * t + jnp.log(d)
    inv = pl.reciprocal(d, approx=True)        # single EUP vrcp instead of divide
    p = jnp.where(x >= 0.0, inv, e * inv)

    if needs_mask:
        # Select-mask the ragged tail: padded zeros would otherwise add log(2)
        # to BCE and 0.5 to psum; rows past the logical end may contain garbage
        # (possibly Inf/NaN), so we use selects, never multiplicative masks.
        row = jax.lax.broadcasted_iota(jnp.int32, x.shape, 0)
        lane = jax.lax.broadcasted_iota(jnp.int32, x.shape, 1)
        idx = (k * tile_rows + row) * lanes + lane
        valid = idx < f_actual
        zero = jnp.zeros_like(x)
        bce_elem = jnp.where(valid, bce_elem, zero)
        p = jnp.where(valid, p, zero)
        t = jnp.where(valid, t, zero)

    # Sublane-only reductions; the tiny lane reduction is deferred to the
    # wrapper so accumulator outputs stay lane-dense (no sub-128 masked stores).
    bce_v = jnp.sum(bce_elem, axis=0, keepdims=True)[None]       # (1, 1, lanes)
    inter_v = jnp.sum(p * t, axis=0, keepdims=True)[None]
    psum_v = jnp.sum(p, axis=0, keepdims=True)[None]
    tsum_v = jnp.sum(t, axis=0, keepdims=True)[None]

    @pl.when(k == 0)
    def _init():
        bce_ref[...] = jnp.zeros_like(bce_ref)
        inter_ref[...] = jnp.zeros_like(inter_ref)
        psum_ref[...] = jnp.zeros_like(psum_ref)
        tsum_ref[...] = jnp.zeros_like(tsum_ref)

    # Output blocks are resident across the "arbitrary" row axis -> accumulate.
    bce_ref[...] += bce_v
    inter_ref[...] += inter_v
    psum_ref[...] += psum_v
    tsum_ref[...] += tsum_v


def _pick_layout(f, block_elems):
    """Pick lane width L (mult. of 128, zero-copy when it divides F) and rows."""
    lanes = None
    for cand in (1024, 512, 256, 128):          # prefer divisor with >= 8 rows
        if f % cand == 0 and f // cand >= 8:
            lanes = cand
            break
    if lanes is None:
        for cand in (128, 256, 512, 1024):      # tiny F: any divisor
            if f % cand == 0:
                lanes = cand
                break
    if lanes is None:
        lanes = 128                             # ragged F: minimal flat pad
    f_pad = _round_up(f, lanes)
    rows = f_pad // lanes
    target_rows = max(8, block_elems // lanes)
    if rows <= target_rows:
        tile_rows = rows                        # full dim -> always a legal block
    else:
        tile_rows = (target_rows // 8) * 8      # multiple of 8; tail tile masked
    return lanes, f_pad, rows, tile_rows


def bce_dice_loss(logits, target, *, block_elems=512 * 1024):
    """logits, target: same-shape N[C,H,W,...] arrays. Returns scalar f32 loss."""
    assert logits.shape == target.shape
    n = logits.shape[0]
    f = math.prod(logits.shape[1:])

    lanes, f_pad, rows, tile_rows = _pick_layout(f, block_elems)
    n_row_tiles = int(pl.cdiv(rows, tile_rows))
    needs_mask = (f_pad != f) or (n_row_tiles * tile_rows != rows)

    # Reshape glue; NO dtype cast here (cast happens inside the kernel so bf16
    # logits / int8-bool targets stream at native width).  The flat pad is only
    # taken when F is not a multiple of 128 (one extra HBM copy in that case).
    x2 = logits.reshape(n, f)
    t2 = target.reshape(n, f)
    if f_pad != f:
        x2 = jnp.pad(x2, ((0, 0), (0, f_pad - f)))
        t2 = jnp.pad(t2, ((0, 0), (0, f_pad - f)))
    x3 = x2.reshape(n, rows, lanes)
    t3 = t2.reshape(n, rows, lanes)

    kernel = functools.partial(
        _bce_dice_kernel, tile_rows=tile_rows, lanes=lanes,
        f_actual=f, needs_mask=needs_mask)

    in_spec = pl.BlockSpec((1, tile_rows, lanes), lambda i, k: (i, k, 0))
    out_spec = pl.BlockSpec((1, 1, lanes), lambda i, k: (i, 0, 0))
    out_shape = jax.ShapeDtypeStruct((n, 1, lanes), jnp.float32)

    # VMEM budget: 2 pipeline buffers per input block + ~8 f32 temporaries of
    # one block + accumulators/slack; clamp at 48 MiB so it also fits v7x's
    # 64 MiB physical VMEM (v5e/v6e have 128 MiB, so this is always safe).
    blk = tile_rows * lanes
    in_bytes = blk * (x3.dtype.itemsize + t3.dtype.itemsize)
    vmem_est = 2 * in_bytes + 8 * blk * 4 + (2 << 20)
    vmem_limit = int(min(max(vmem_est, 16 << 20), 48 << 20))

    bce_p, inter_p, psum_p, tsum_p = pl.pallas_call(
        kernel,
        out_shape=(out_shape,) * 4,
        grid_spec=pltpu.PrefetchScalarGridSpec(
            num_scalar_prefetch=0,
            grid=(n, n_row_tiles),
            in_specs=[in_spec, in_spec],
            out_specs=(out_spec,) * 4,
        ),
        compiler_params=pltpu.CompilerParams(
            dimension_semantics=("parallel", "arbitrary"),
            vmem_limit_bytes=vmem_limit,
        ),
    )(x3, t3)

    # Trivial final combine on tiny (N, 1, L) partials.
    smooth = 1e-05
    inv_total = 1.0 / float(n * f)      # trace-time constants: no in-kernel div
    inv_n = 1.0 / float(n)

    bce = jnp.sum(bce_p) * inv_total
    inter = jnp.sum(inter_p, axis=(1, 2))
    psum = jnp.sum(psum_p, axis=(1, 2))
    tsum = jnp.sum(tsum_p, axis=(1, 2))
    dice = (2.0 * inter + smooth) / (psum + tsum + smooth)
    dice_loss = 1.0 - jnp.sum(dice) * inv_n
    return 0.5 * bce + dice_loss


def _reference(logits, target):
    # Pure-JAX reference mirroring the PyTorch module.
    x = logits.astype(jnp.float32)
    t = target.astype(jnp.float32)
    bce = jnp.mean(jnp.maximum(x, 0.0) - x * t + jnp.log1p(jnp.exp(-jnp.abs(x))))
    smooth = 1e-05
    n = x.shape[0]
    p = jax.nn.sigmoid(x).reshape(n, -1)
    tt = t.reshape(n, -1)
    inter = jnp.sum(p * tt, axis=1)
    dice = (2.0 * inter + smooth) / (jnp.sum(p, axis=1) + jnp.sum(tt, axis=1) + smooth)
    dice_loss = 1.0 - jnp.sum(dice) / n
    return 0.5 * bce + dice_loss


if __name__ == "__main__":
    key = jax.random.PRNGKey(0)
    keys = jax.random.split(key, 8)
    # approx-reciprocal sigmoid introduces ~1e-4 relative error -> 1e-3 tol.
    tol = dict(atol=1e-3, rtol=1e-3)

    # Case 1: small aligned NCHW input (F = 1024 -> 8x128 block, no mask).
    logits = jax.random.normal(keys[0], (2, 4, 16, 16), dtype=jnp.float32)
    target = (jax.random.uniform(keys[1], (2, 4, 16, 16)) > 0.5).astype(jnp.float32)
    loss = bce_dice_loss(logits, target)
    jax.block_until_ready(loss)
    assert jnp.allclose(loss, _reference(logits, target), **tol), loss

    # Case 2: non-128-aligned F (969) -> minimal flat pad + in-kernel mask.
    logits2 = jax.random.normal(keys[2], (2, 3, 17, 19), dtype=jnp.float32)
    target2 = (jax.random.uniform(keys[3], (2, 3, 17, 19)) > 0.5).astype(jnp.float32)
    loss2 = bce_dice_loss(logits2, target2)
    jax.block_until_ready(loss2)
    assert jnp.allclose(loss2, _reference(logits2, target2), **tol), loss2

    # Case 3: multi row-tile accumulation across the "arbitrary" axis.
    logits3 = jax.random.normal(keys[4], (2, 16, 32, 32), dtype=jnp.float32)
    target3 = (jax.random.uniform(keys[5], (2, 16, 32, 32)) > 0.5).astype(jnp.float32)
    loss3 = bce_dice_loss(logits3, target3, block_elems=8 * 1024)
    jax.block_until_ready(loss3)
    assert jnp.allclose(loss3, _reference(logits3, target3), **tol), loss3

    # Case 4: partial trailing row tile (rows % tile_rows != 0) -> garbage mask.
    logits4 = jax.random.normal(keys[6], (2, 3, 32, 32), dtype=jnp.float32)
    target4 = (jax.random.uniform(keys[7], (2, 3, 32, 32)) > 0.5).astype(jnp.float32)
    loss4 = bce_dice_loss(logits4, target4, block_elems=2 * 1024)
    jax.block_until_ready(loss4)
    assert jnp.allclose(loss4, _reference(logits4, target4), **tol), loss4

    print("KERNEL_OK")
</pallas_src>

<mosaic_0001>
module attributes {stable_mosaic.version = 11 : i64} {
  func.func @_bce_dice_kernel(%arg0: i32, %arg1: i32, %arg2: memref<1x8x128xf32, #tpu.memory_space<vmem>>, %arg3: memref<1x8x128xf32, #tpu.memory_space<vmem>>, %arg4: memref<1x1x128xf32, #tpu.memory_space<vmem>>, %arg5: memref<1x1x128xf32, #tpu.memory_space<vmem>>, %arg6: memref<1x1x128xf32, #tpu.memory_space<vmem>>, %arg7: memref<1x1x128xf32, #tpu.memory_space<vmem>>) attributes {dimension_semantics = [#tpu.dimension_semantics<parallel>, #tpu.dimension_semantics<arbitrary>], iteration_bounds = array<i64: 2, 1>, scalar_prefetch = 0 : i64, scratch_operands = 0 : i64, tpu.core_type = #tpu.core_type<tc>, window_params = [{transform_indices = @transform_0, window_bounds = array<i64: 1, 8, 128>}, {transform_indices = @transform_1, window_bounds = array<i64: 1, 8, 128>}, {transform_indices = @transform_2, window_bounds = array<i64: 1, 1, 128>}, {transform_indices = @transform_3, window_bounds = array<i64: 1, 1, 128>}, {transform_indices = @transform_4, window_bounds = array<i64: 1, 1, 128>}, {transform_indices = @transform_5, window_bounds = array<i64: 1, 1, 128>}]} {
    %c0 = arith.constant 0 : index
    %c0_0 = arith.constant 0 : index
    %c0_1 = arith.constant 0 : index
    %0 = vector.load %arg2[%c0, %c0_0, %c0_1] : memref<1x8x128xf32, #tpu.memory_space<vmem>>, vector<1x8x128xf32>
    %1 = vector.shape_cast %0 : vector<1x8x128xf32> to vector<8x128xf32>
    %c0_2 = arith.constant 0 : index
    %c0_3 = arith.constant 0 : index
    %c0_4 = arith.constant 0 : index
    %2 = vector.load %arg3[%c0_2, %c0_3, %c0_4] : memref<1x8x128xf32, #tpu.memory_space<vmem>>, vector<1x8x128xf32>
    %3 = vector.shape_cast %2 : vector<1x8x128xf32> to vector<8x128xf32>
    %4 = math.absf %1 : vector<8x128xf32>
    %cst = arith.constant 0.000000e+00 : f32
    %5 = vector.broadcast %cst : f32 to vector<8x128xf32>
    %6 = arith.subf %5, %4 : vector<8x128xf32>
    %7 = math.exp %6 : vector<8x128xf32>
    %cst_5 = arith.constant 1.000000e+00 : f32
    %8 = vector.broadcast %cst_5 : f32 to vector<8x128xf32>
    %9 = arith.addf %8, %7 : vector<8x128xf32>
    %cst_6 = arith.constant 0.000000e+00 : f32
    %10 = vector.broadcast %cst_6 : f32 to vector<8x128xf32>
    %11 = arith.maximumf %1, %10 : vector<8x128xf32>
    %12 = arith.mulf %1, %3 : vector<8x128xf32>
    %13 = arith.subf %11, %12 : vector<8x128xf32>
    %14 = math.log %9 : vector<8x128xf32>
    %15 = arith.addf %13, %14 : vector<8x128xf32>
    %16 = tpu.reciprocal %9 {approx = true} : vector<8x128xf32> -> vector<8x128xf32>
    %cst_7 = arith.constant 0.000000e+00 : f32
    %17 = vector.broadcast %cst_7 : f32 to vector<8x128xf32>
    %18 = arith.cmpf oge, %1, %17 : vector<8x128xf32>
    %19 = arith.mulf %7, %16 : vector<8x128xf32>
    %20 = arith.select %18, %16, %19 : vector<8x128xi1>, vector<8x128xf32>
    %cst_8 = arith.constant dense<0.000000e+00> : vector<128xf32>
    %21 = vector.multi_reduction <add>, %15, %cst_8 [0] : vector<8x128xf32> to vector<128xf32>
    %22 = vector.shape_cast %21 : vector<128xf32> to vector<1x128xf32>
    %23 = vector.shape_cast %22 : vector<1x128xf32> to vector<1x1x128xf32>
    %24 = arith.mulf %20, %3 : vector<8x128xf32>
    %cst_9 = arith.constant dense<0.000000e+00> : vector<128xf32>
    %25 = vector.multi_reduction <add>, %24, %cst_9 [0] : vector<8x128xf32> to vector<128xf32>
    %26 = vector.shape_cast %25 : vector<128xf32> to vector<1x128xf32>
    %27 = vector.shape_cast %26 : vector<1x128xf32> to vector<1x1x128xf32>
    %cst_10 = arith.constant dense<0.000000e+00> : vector<128xf32>
    %28 = vector.multi_reduction <add>, %20, %cst_10 [0] : vector<8x128xf32> to vector<128xf32>
    %29 = vector.shape_cast %28 : vector<128xf32> to vector<1x128xf32>
    %30 = vector.shape_cast %29 : vector<1x128xf32> to vector<1x1x128xf32>
    %cst_11 = arith.constant dense<0.000000e+00> : vector<128xf32>
    %31 = vector.multi_reduction <add>, %3, %cst_11 [0] : vector<8x128xf32> to vector<128xf32>
    %32 = vector.shape_cast %31 : vector<128xf32> to vector<1x128xf32>
    %33 = vector.shape_cast %32 : vector<1x128xf32> to vector<1x1x128xf32>
    %c0_i32 = arith.constant 0 : i32
    %34 = arith.cmpi eq, %arg1, %c0_i32 : i32
    %35 = arith.extui %34 : i1 to i32
    %c0_i32_12 = arith.constant 0 : i32
    %36 = arith.cmpi ne, %35, %c0_i32_12 : i32
    scf.if %36 {
      %cst_37 = arith.constant 0.000000e+00 : f32
      %49 = vector.broadcast %cst_37 : f32 to vector<1x1x128xf32>
      %c0_38 = arith.constant 0 : index
      %c0_39 = arith.constant 0 : index
      %c0_40 = arith.constant 0 : index
      %50 = vector.load %arg4[%c0_38, %c0_39, %c0_40] : memref<1x1x128xf32, #tpu.memory_space<vmem>>, vector<1x1x128xf32>
      tpu.vector_store %arg4[%c0_38, %c0_39, %c0_40], %49 {strides = array<i32>} : memref<1x1x128xf32, #tpu.memory_space<vmem>>, vector<1x1x128xf32>,
      %cst_41 = arith.constant 0.000000e+00 : f32
      %51 = vector.broadcast %cst_41 : f32 to vector<1x1x128xf32>
      %c0_42 = arith.constant 0 : index
      %c0_43 = arith.constant 0 : index
      %c0_44 = arith.constant 0 : index
      %52 = vector.load %arg5[%c0_42, %c0_43, %c0_44] : memref<1x1x128xf32, #tpu.memory_space<vmem>>, vector<1x1x128xf32>
      tpu.vector_store %arg5[%c0_42, %c0_43, %c0_44], %51 {strides = array<i32>} : memref<1x1x128xf32, #tpu.memory_space<vmem>>, vector<1x1x128xf32>,
      %cst_45 = arith.constant 0.000000e+00 : f32
      %53 = vector.broadcast %cst_45 : f32 to vector<1x1x128xf32>
      %c0_46 = arith.constant 0 : index
      %c0_47 = arith.constant 0 : index
      %c0_48 = arith.constant 0 : index
      %54 = vector.load %arg6[%c0_46, %c0_47, %c0_48] : memref<1x1x128xf32, #tpu.memory_space<vmem>>, vector<1x1x128xf32>
      tpu.vector_store %arg6[%c0_46, %c0_47, %c0_48], %53 {strides = array<i32>} : memref<1x1x128xf32, #tpu.memory_space<vmem>>, vector<1x1x128xf32>,
      %cst_49 = arith.constant 0.000000e+00 : f32
      %55 = vector.broadcast %cst_49 : f32 to vector<1x1x128xf32>
      %c0_50 = arith.constant 0 : index
      %c0_51 = arith.constant 0 : index
      %c0_52 = arith.constant 0 : index
      %56 = vector.load %arg7[%c0_50, %c0_51, %c0_52] : memref<1x1x128xf32, #tpu.memory_space<vmem>>, vector<1x1x128xf32>
      tpu.vector_store %arg7[%c0_50, %c0_51, %c0_52], %55 {strides = array<i32>} : memref<1x1x128xf32, #tpu.memory_space<vmem>>, vector<1x1x128xf32>,
    } else {
    }
    %c0_13 = arith.constant 0 : index
    %c0_14 = arith.constant 0 : index
    %c0_15 = arith.constant 0 : index
    %37 = vector.load %arg4[%c0_13, %c0_14, %c0_15] : memref<1x1x128xf32, #tpu.memory_space<vmem>>, vector<1x1x128xf32>
    %38 = arith.addf %37, %23 : vector<1x1x128xf32>
    %c0_16 = arith.constant 0 : index
    %c0_17 = arith.constant 0 : index
    %c0_18 = arith.constant 0 : index
    %39 = vector.load %arg4[%c0_16, %c0_17, %c0_18] : memref<1x1x128xf32, #tpu.memory_space<vmem>>, vector<1x1x128xf32>
    tpu.vector_store %arg4[%c0_16, %c0_17, %c0_18], %38 {strides = array<i32>} : memref<1x1x128xf32, #tpu.memory_space<vmem>>, vector<1x1x128xf32>,
    %c0_19 = arith.constant 0 : index
    %c0_20 = arith.constant 0 : index
    %c0_21 = arith.constant 0 : index
    %40 = vector.load %arg5[%c0_19, %c0_20, %c0_21] : memref<1x1x128xf32, #tpu.memory_space<vmem>>, vector<1x1x128xf32>
    %41 = arith.addf %40, %27 : vector<1x1x128xf32>
    %c0_22 = arith.constant 0 : index
    %c0_23 = arith.constant 0 : index
    %c0_24 = arith.constant 0 : index
    %42 = vector.load %arg5[%c0_22, %c0_23, %c0_24] : memref<1x1x128xf32, #tpu.memory_space<vmem>>, vector<1x1x128xf32>
    tpu.vector_store %arg5[%c0_22, %c0_23, %c0_24], %41 {strides = array<i32>} : memref<1x1x128xf32, #tpu.memory_space<vmem>>, vector<1x1x128xf32>,
    %c0_25 = arith.constant 0 : index
    %c0_26 = arith.constant 0 : index
    %c0_27 = arith.constant 0 : index
    %43 = vector.load %arg6[%c0_25, %c0_26, %c0_27] : memref<1x1x128xf32, #tpu.memory_space<vmem>>, vector<1x1x128xf32>
    %44 = arith.addf %43, %30 : vector<1x1x128xf32>
    %c0_28 = arith.constant 0 : index
    %c0_29 = arith.constant 0 : index
    %c0_30 = arith.constant 0 : index
    %45 = vector.load %arg6[%c0_28, %c0_29, %c0_30] : memref<1x1x128xf32, #tpu.memory_space<vmem>>, vector<1x1x128xf32>
    tpu.vector_store %arg6[%c0_28, %c0_29, %c0_30], %44 {strides = array<i32>} : memref<1x1x128xf32, #tpu.memory_space<vmem>>, vector<1x1x128xf32>,
    %c0_31 = arith.constant 0 : index
    %c0_32 = arith.constant 0 : index
    %c0_33 = arith.constant 0 : index
    %46 = vector.load %arg7[%c0_31, %c0_32, %c0_33] : memref<1x1x128xf32, #tpu.memory_space<vmem>>, vector<1x1x128xf32>
    %47 = arith.addf %46, %33 : vector<1x1x128xf32>
    %c0_34 = arith.constant 0 : index
    %c0_35 = arith.constant 0 : index
    %c0_36 = arith.constant 0 : index
    %48 = vector.load %arg7[%c0_34, %c0_35, %c0_36] : memref<1x1x128xf32, #tpu.memory_space<vmem>>, vector<1x1x128xf32>
    tpu.vector_store %arg7[%c0_34, %c0_35, %c0_36], %47 {strides = array<i32>} : memref<1x1x128xf32, #tpu.memory_space<vmem>>, vector<1x1x128xf32>,
    return
  }
  func.func @transform_0(%arg0: i32, %arg1: i32) -> (i32, i32, i32) {
    %c0_i32 = arith.constant 0 : i32
    %c0_i32_0 = arith.constant 0 : i32
    return %arg0, %arg1, %c0_i32 : i32, i32, i32
  }
  func.func @transform_1(%arg0: i32, %arg1: i32) -> (i32, i32, i32) {
    %c0_i32 = arith.constant 0 : i32
    %c0_i32_0 = arith.constant 0 : i32
    return %arg0, %arg1, %c0_i32 : i32, i32, i32
  }
  func.func @transform_2(%arg0: i32, %arg1: i32) -> (i32, i32, i32) {
    %c0_i32 = arith.constant 0 : i32
    %c0_i32_0 = arith.constant 0 : i32
    %c0_i32_1 = arith.constant 0 : i32
    return %arg0, %c0_i32, %c0_i32_0 : i32, i32, i32
  }
  func.func @transform_3(%arg0: i32, %arg1: i32) -> (i32, i32, i32) {
    %c0_i32 = arith.constant 0 : i32
    %c0_i32_0 = arith.constant 0 : i32
    %c0_i32_1 = arith.constant 0 : i32
    return %arg0, %c0_i32, %c0_i32_0 : i32, i32, i32
  }
  func.func @transform_4(%arg0: i32, %arg1: i32) -> (i32, i32, i32) {
    %c0_i32 = arith.constant 0 : i32
    %c0_i32_0 = arith.constant 0 : i32
    %c0_i32_1 = arith.constant 0 : i32
    return %arg0, %c0_i32, %c0_i32_0 : i32, i32, i32
  }
  func.func @transform_5(%arg0: i32, %arg1: i32) -> (i32, i32, i32) {
    %c0_i32 = arith.constant 0 : i32
    %c0_i32_0 = arith.constant 0 : i32
    %c0_i32_1 = arith.constant 0 : i32
    return %arg0, %c0_i32, %c0_i32_0 : i32, i32, i32
  }
}

</mosaic_0001>

<llo_original>
// kernel: tpu_custom_call.1
$region0: #{tpu_custom_call.1}
  #allocation0 [shape = 'u32[]', space=smem, size = 0x4, offset = 0x4, fixed_abs, tag = 'smem constant byte address 0x4 - core index']
  #allocation1 [shape = 'u32[144,128]{1,0:T(1,128)}', space=vmem, size = 0x12000, scoped, tag = 'internal scratch']
  %s0 = inlined_call_operand.hbm [shape: f32[2,8,128], index: 0, kind: input, shape index: {}]
  %s1 = inlined_call_operand.hbm [shape: f32[2,8,128], index: 1, kind: input, shape index: {}]
  %s2 = inlined_call_operand.hbm [shape: f32[2,1,128], index: 2, kind: output, shape index: {0}]
  %s3 = inlined_call_operand.hbm [shape: f32[2,1,128], index: 3, kind: output, shape index: {1}]
  %s4 = inlined_call_operand.hbm [shape: f32[2,1,128], index: 4, kind: output, shape index: {2}]
  %s5 = inlined_call_operand.hbm [shape: f32[2,1,128], index: 5, kind: output, shape index: {3}]
  %6 = xla_tuple %s2, %s3, %s4, %s5
  %s7 = sld [smem:[#allocation0]]
  $region77: #{tpu_custom_call.1} parent=0
    _
  %s9 = ssub.s32 1, %s7
  %s10 = scalar_select 0, %s9, %s7
  $region1: #{tpu_custom_call.1} parent=0
    #allocation2 [shape = 'u8[8192]{0}', space=vmem, size = 0x2000, scoped, tag = 'input window, operand 0']
    #allocation3 [shape = 's32[2]{0}', space=sflag, size = 0x8, scoped, tag = 'scoped memory for tpu_custom_call.1']
    #allocation4 [shape = 's32[2]{0}', space=sflag, size = 0x8, scoped, tag = 'scoped memory for tpu_custom_call.1']
    #allocation5 [shape = 'u8[8192]{0}', space=vmem, size = 0x2000, scoped, tag = 'input window, operand 1']
    #allocation6 [shape = 's32[2]{0}', space=sflag, size = 0x8, scoped, tag = 'scoped memory for tpu_custom_call.1']
    #allocation7 [shape = 'u8[1024]{0}', space=vmem, size = 0x400, scoped, tag = 'output window, operand 0']
    #allocation8 [shape = 'u8[1024]{0}', space=vmem, size = 0x400, scoped, tag = 'output window, operand 1']
    #allocation9 [shape = 's32[2]{0}', space=sflag, size = 0x8, scoped, tag = 'scoped memory for tpu_custom_call.1']
    #allocation10 [shape = 'u8[1024]{0}', space=vmem, size = 0x400, scoped, tag = 'output window, operand 2']
    #allocation11 [shape = 'u8[1024]{0}', space=vmem, size = 0x400, scoped, tag = 'output window, operand 3']
    #allocation12 [shape = 's32[2]{0}', space=sflag, size = 0x8, scoped, tag = 'scoped memory for tpu_custom_call.1']
    %11 = vsyncpa [#allocation3], 0
    %s12 = scalar_lea.sflag [#allocation3], 1
    %13 = vsyncpa %s12, 0
    %14 = vsyncpa [#allocation6], 0
    %s15 = scalar_lea.sflag [#allocation6], 1
    %16 = vsyncpa %s15, 0
    %17 = vsyncpa [#allocation4], 0
    %s18 = scalar_lea.sflag [#allocation4], 1
    %19 = vsyncpa %s18, 0
    %20 = vsyncpa [#allocation9], 0
    %s21 = scalar_lea.sflag [#allocation9], 1
    %22 = vsyncpa %s21, 0
    %23 = vsyncpa [#allocation12], 0
    %s24 = scalar_lea.sflag [#allocation12], 1
    %25 = vsyncpa %s24, 0
    loop: start=0, step=1, limit=4
    $region2: #{tpu_custom_call.1} parent=1 // loop_pre_header
      _
    $region3: #{tpu_custom_call.1} parent=1 // loop_header
      %s27 = sphi 0, %s31
      %p28 = scmp.ge.s32.totalorder %s27, 4
      %s34 = sphi 0, %s46
      %s35 = sphi 0, %s42
      %s36 = sphi 0, %s34
      %s37 = sphi 0, %s35
      %s38 = sphi 0, %s36
      %s39 = sphi 0, %s37
      %s51 = sphi 0, %s53
      %s54 = sphi 0, %s51
      %s55 = sphi 0, %s54
      %s71 = sphi 0, %s55
      %s79 = sphi 0, %s81
      %s82 = sphi 0, %s79
      %s83 = sphi 0, %s82
      %s99 = sphi 0, %s83
      %s105 = sphi 0, %s107
      %s108 = sphi 0, %s105
      %s109 = sphi 0, %s108
      %s125 = sphi 0, %s109
      %s131 = sphi 0, %s133
      %s134 = sphi 0, %s131
      %s135 = sphi 0, %s134
      %s151 = sphi 0, %s135
      %s157 = sphi 0, %s159
      %s160 = sphi 0, %s157
      %s161 = sphi 0, %s160
      %s177 = sphi 0, %s161
      %s183 = sphi 0, %s185
      %s186 = sphi 0, %s183
      %s187 = sphi 0, %s186
      %s203 = sphi 0, %s187
    $region4: #{tpu_custom_call.1} parent=1 // loop_header_branch
      %30 = sbr.rel (%p28) target = $region8
    $region5: #{tpu_custom_call.1} parent=1 // loop_body
      %s32 = ssub.s32 %s27, 1
      %s33 = ssub.s32 %s27, 2
      %s40 = sadd.s32 1, %s35
      %p41 = scmp.ge.s32.totalorder %s40, 1
      %s42 = scalar_select %p41, 0, %s40
      %s43 = sadd.s32 1, %s34
      %s44 = scalar_select %p41, %s43, %s34
      %p45 = scmp.ge.s32.totalorder %s44, 2
      %s46 = scalar_select %p45, 0, %s44
      %s47 = ssub.s32 %s34, %s46
      %s48 = ssub.s32 %s35, %s42
      %s49 = sor.u32 %s47, %s48
      %p50 = scmp.eq.s32.totalorder %s49, 0
      %s52 = sadd.s32 %s51, 1
      %s53 = scalar_select %p50, %s51, %s52
      %p56 = pneg %p50
      %p57 = scmp.eq.s32.totalorder %s27, 1
      %p58 = por %p56, %p57
      %p59 = scmp.ne.s32.totalorder %s51, %s54
      %p60 = scmp.eq.s32.totalorder %s27, 0
      %p61 = por %p59, %p60
      %p62 = scmp.ne.s32.totalorder %s51, %s54
      %p63 = scmp.eq.s32.totalorder %s32, 1
      %p64 = por %p62, %p63
      %p65 = scmp.ne.s32.totalorder %s54, %s55
      %p66 = scmp.eq.s32.totalorder %s32, 0
      %p67 = por %p65, %p66
      %p68 = scmp.ne.s32.totalorder %s54, %s55
      %p69 = scmp.eq.s32.totalorder %s33, 1
      %p70 = por %p68, %p69
      %p72 = scmp.ne.s32.totalorder %s55, %s71
      %p73 = scmp.eq.s32.totalorder %s33, 0
      %p74 = por %p72, %p73
      %s75 = ssub.s32 %s34, %s46
      %s76 = ssub.s32 %s35, %s42
      %s77 = sor.u32 %s75, %s76
      %p78 = scmp.eq.s32.totalorder %s77, 0
      %s80 = sadd.s32 %s79, 1
      %s81 = scalar_select %p78, %s79, %s80
      %p84 = pneg %p78
      %p85 = scmp.eq.s32.totalorder %s27, 1
      %p86 = por %p84, %p85
      %p87 = scmp.ne.s32.totalorder %s79, %s82
      %p88 = scmp.eq.s32.totalorder %s27, 0
      %p89 = por %p87, %p88
      %p90 = scmp.ne.s32.totalorder %s79, %s82
      %p91 = scmp.eq.s32.totalorder %s32, 1
      %p92 = por %p90, %p91
      %p93 = scmp.ne.s32.totalorder %s82, %s83
      %p94 = scmp.eq.s32.totalorder %s32, 0
      %p95 = por %p93, %p94
      %p96 = scmp.ne.s32.totalorder %s82, %s83
      %p97 = scmp.eq.s32.totalorder %s33, 1
      %p98 = por %p96, %p97
      %p100 = scmp.ne.s32.totalorder %s83, %s99
      %p101 = scmp.eq.s32.totalorder %s33, 0
      %p102 = por %p100, %p101
      %s103 = ssub.s32 %s34, %s46
      %p104 = scmp.eq.s32.totalorder %s103, 0
      %s106 = sadd.s32 %s105, 1
      %s107 = scalar_select %p104, %s105, %s106
      %p110 = pneg %p104
      %p111 = scmp.eq.s32.totalorder %s27, 1
      %p112 = por %p110, %p111
      %p113 = scmp.ne.s32.totalorder %s105, %s108
      %p114 = scmp.eq.s32.totalorder %s27, 0
      %p115 = por %p113, %p114
      %p116 = scmp.ne.s32.totalorder %s105, %s108
      %p117 = scmp.eq.s32.totalorder %s32, 1
      %p118 = por %p116, %p117
      %p119 = scmp.ne.s32.totalorder %s108, %s109
      %p120 = scmp.eq.s32.totalorder %s32, 0
      %p121 = por %p119, %p120
      %p122 = scmp.ne.s32.totalorder %s108, %s109
      %p123 = scmp.eq.s32.totalorder %s33, 1
      %p124 = por %p122, %p123
      %p126 = scmp.ne.s32.totalorder %s109, %s125
      %p127 = scmp.eq.s32.totalorder %s33, 0
      %p128 = por %p126, %p127
      %s129 = ssub.s32 %s34, %s46
      %p130 = scmp.eq.s32.totalorder %s129, 0
      %s132 = sadd.s32 %s131, 1
      %s133 = scalar_select %p130, %s131, %s132
      %p136 = pneg %p130
      %p137 = scmp.eq.s32.totalorder %s27, 1
      %p138 = por %p136, %p137
      %p139 = scmp.ne.s32.totalorder %s131, %s134
      %p140 = scmp.eq.s32.totalorder %s27, 0
      %p141 = por %p139, %p140
      %p142 = scmp.ne.s32.totalorder %s131, %s134
      %p143 = scmp.eq.s32.totalorder %s32, 1
      %p144 = por %p142, %p143
      %p145 = scmp.ne.s32.totalorder %s134, %s135
      %p146 = scmp.eq.s32.totalorder %s32, 0
      %p147 = por %p145, %p146
      %p148 = scmp.ne.s32.totalorder %s134, %s135
      %p149 = scmp.eq.s32.totalorder %s33, 1
      %p150 = por %p148, %p149
      %p152 = scmp.ne.s32.totalorder %s135, %s151
      %p153 = scmp.eq.s32.totalorder %s33, 0
      %p154 = por %p152, %p153
      %s155 = ssub.s32 %s34, %s46
      %p156 = scmp.eq.s32.totalorder %s155, 0
      %s158 = sadd.s32 %s157, 1
      %s159 = scalar_select %p156, %s157, %s158
      %p162 = pneg %p156
      %p163 = scmp.eq.s32.totalorder %s27, 1
      %p164 = por %p162, %p163
      %p165 = scmp.ne.s32.totalorder %s157, %s160
      %p166 = scmp.eq.s32.totalorder %s27, 0
      %p167 = por %p165, %p166
      %p168 = scmp.ne.s32.totalorder %s157, %s160
      %p169 = scmp.eq.s32.totalorder %s32, 1
      %p170 = por %p168, %p169
      %p171 = scmp.ne.s32.totalorder %s160, %s161
      %p172 = scmp.eq.s32.totalorder %s32, 0
      %p173 = por %p171, %p172
      %p174 = scmp.ne.s32.totalorder %s160, %s161
      %p175 = scmp.eq.s32.totalorder %s33, 1
      %p176 = por %p174, %p175
      %p178 = scmp.ne.s32.totalorder %s161, %s177
      %p179 = scmp.eq.s32.totalorder %s33, 0
      %p180 = por %p178, %p179
      %s181 = ssub.s32 %s34, %s46
      %p182 = scmp.eq.s32.totalorder %s181, 0
      %s184 = sadd.s32 %s183, 1
      %s185 = scalar_select %p182, %s183, %s184
      %p188 = pneg %p182
      %p189 = scmp.eq.s32.totalorder %s27, 1
      %p190 = por %p188, %p189
      %p191 = scmp.ne.s32.totalorder %s183, %s186
      %p192 = scmp.eq.s32.totalorder %s27, 0
      %p193 = por %p191, %p192
      %p194 = scmp.ne.s32.totalorder %s183, %s186
      %p195 = scmp.eq.s32.totalorder %s32, 1
      %p196 = por %p194, %p195
      %p197 = scmp.ne.s32.totalorder %s186, %s187
      %p198 = scmp.eq.s32.totalorder %s32, 0
      %p199 = por %p197, %p198
      %p200 = scmp.ne.s32.totalorder %s186, %s187
      %p201 = scmp.eq.s32.totalorder %s33, 1
      %p202 = por %p200, %p201
      %p204 = scmp.ne.s32.totalorder %s187, %s203
      %p205 = scmp.eq.s32.totalorder %s33, 0
      %p206 = por %p204, %p205
      %p207 = scmp.le.s32.totalorder 1, %s27
      %p208 = scmp.lt.s32.totalorder %s27, 3
      %p209 = pnand %p207, %p208
      %p210 = pneg %p209
      // Predicated region
      $region9: #{tpu_custom_call.1} parent=5 // pred_check
        _
      $region10: #{tpu_custom_call.1} parent=5 // pred_check_branch
        %212 = sbr.rel (%p209) target = $region12
      $region11: #{tpu_custom_call.1} parent=5 // pred_region
        %s213 = ssub.s32 %s27, 1
      $region12: #{tpu_custom_call.1} parent=5 // pred_fallthru
        _
      %p214 = scmp.lt.s32.totalorder %s27, 2
      // Predicated region
      $region13: #{tpu_custom_call.1} parent=5 // pred_check
        %p215 = pneg %p214
      $region14: #{tpu_custom_call.1} parent=5 // pred_check_branch
        %217 = sbr.rel (%p215) target = $region16
      $region15: #{tpu_custom_call.1} parent=5 // pred_region
        // Predicated region
        $region17: #{tpu_custom_call.1} parent=15 // pred_check
          %p218 = pneg %p61
        $region18: #{tpu_custom_call.1} parent=15 // pred_check_branch
          %220 = sbr.rel (%p218) target = $region20
        $region19: #{tpu_custom_call.1} parent=15 // pred_region
          %s221 = sand.u32 %s51, 1
          %s222 = scalar_lea.sflag [#allocation3], %s221
          %s223 = sand.u32 %s51, 1
          %s224 = smul.addr %s223, 8
          %s225 = scalar_lea.vmem [#allocation2], %s224
          %s227 = ssub.s32 128, 128
          %228 = vsyncadd %s222, %s227
          %s229 = sadd.s32 %s35, %s34
          %s230 = smul.addr %s229, 128
          %s231 = scalar_lea.hbm %s0, %s230
          %s233 = sshll.u32 %s225, 4
          %s234 = int_to_ptr.vmem [resolvable:$true] %s233
          %236 = dma.hbm_to_vmem [thread:$0]  %s231, 128, %s234, %s222
        $region20: #{tpu_custom_call.1} parent=15 // pred_fallthru
          _
        // Predicated region
        $region21: #{tpu_custom_call.1} parent=15 // pred_check
          %p237 = pneg %p89
        $region22: #{tpu_custom_call.1} parent=15 // pred_check_branch
          %239 = sbr.rel (%p237) target = $region24
        $region23: #{tpu_custom_call.1} parent=15 // pred_region
          %s240 = sand.u32 %s79, 1
          %s241 = scalar_lea.sflag [#allocation6], %s240
          %s242 = sand.u32 %s79, 1
          %s243 = smul.addr %s242, 8
          %s244 = scalar_lea.vmem [#allocation5], %s243
          %s246 = ssub.s32 128, 128
          %247 = vsyncadd %s241, %s246
          %s248 = sadd.s32 %s35, %s34
          %s249 = smul.addr %s248, 128
          %s250 = scalar_lea.hbm %s1, %s249
          %s252 = sshll.u32 %s244, 4
          %s253 = int_to_ptr.vmem [resolvable:$true] %s252
          %255 = dma.hbm_to_vmem [thread:$0]  %s250, 128, %s253, %s241
        $region24: #{tpu_custom_call.1} parent=15 // pred_fallthru
          _
      $region16: #{tpu_custom_call.1} parent=5 // pred_fallthru
        _
      %p256 = scmp.le.s32.totalorder 1, %s27
      %p257 = scmp.lt.s32.totalorder %s27, 3
      %p258 = pnand %p256, %p257
      %p259 = pneg %p258
      // Predicated region
      $region25: #{tpu_custom_call.1} parent=5 // pred_check
        _
      $region26: #{tpu_custom_call.1} parent=5 // pred_check_branch
        %261 = sbr.rel (%p258) target = $region28
      $region27: #{tpu_custom_call.1} parent=5 // pred_region
        %s262 = ssub.s32 %s27, 1
        %s263 = sand.u32 %s54, 1
        %s264 = scalar_lea.sflag [#allocation3], %s263
        %s265 = sand.u32 %s54, 1
        %s266 = smul.addr %s265, 8
        %s267 = scalar_lea.vmem [#allocation2], %s266
        // Predicated region
        $region29: #{tpu_custom_call.1} parent=27 // pred_check
          %p268 = pneg %p67
        $region30: #{tpu_custom_call.1} parent=27 // pred_check_branch
          %270 = sbr.rel (%p268) target = $region32
        $region31: #{tpu_custom_call.1} parent=27 // pred_region
          %271 = dma.done %s264, 128
        $region32: #{tpu_custom_call.1} parent=27 // pred_fallthru
          _
        %s272 = sand.u32 %s82, 1
        %s273 = scalar_lea.sflag [#allocation6], %s272
        %s274 = sand.u32 %s82, 1
        %s275 = smul.addr %s274, 8
        %s276 = scalar_lea.vmem [#allocation5], %s275
        // Predicated region
        $region33: #{tpu_custom_call.1} parent=27 // pred_check
          %p277 = pneg %p95
        $region34: #{tpu_custom_call.1} parent=27 // pred_check_branch
          %279 = sbr.rel (%p277) target = $region36
        $region35: #{tpu_custom_call.1} parent=27 // pred_region
          %280 = dma.done %s273, 128
        $region36: #{tpu_custom_call.1} parent=27 // pred_fallthru
          _
        %s281 = sand.u32 %s54, 1
        %s282 = scalar_lea.sflag [#allocation3], %s281
        %s283 = sand.u32 %s54, 1
        %s284 = smul.addr %s283, 8
        %s285 = scalar_lea.vmem [#allocation2], %s284
        %p286 = pneg %p67
        %p287 = pneg %p64
        %s288 = sand.u32 %s82, 1
        %s289 = scalar_lea.sflag [#allocation6], %s288
        %s290 = sand.u32 %s82, 1
        %s291 = smul.addr %s290, 8
        %s292 = scalar_lea.vmem [#allocation5], %s291
        %p293 = pneg %p95
        %p294 = pneg %p92
        %p295 = pneg %p121
        %p296 = pneg %p118
        %s297 = sand.u32 %s108, 1
        %s298 = scalar_lea.sflag [#allocation4], %s297
        %s299 = sand.u32 %s108, 1
        %s300 = scalar_lea.vmem [#allocation7], %s299
        %p301 = pneg %p147
        %p302 = pneg %p144
        %s303 = sand.u32 %s32, 1
        %s304 = scalar_lea.sflag [#allocation9], %s303
        %s305 = sand.u32 %s134, 1
        %s306 = scalar_lea.vmem [#allocation8], %s305
        %p307 = pneg %p173
        %p308 = pneg %p170
        %s309 = sand.u32 %s32, 1
        %s310 = scalar_lea.sflag [#allocation9], %s309
        %s311 = sand.u32 %s160, 1
        %s312 = scalar_lea.vmem [#allocation10], %s311
        %p313 = pneg %p199
        %p314 = pneg %p196
        %s315 = sand.u32 %s186, 1
        %s316 = scalar_lea.sflag [#allocation12], %s315
        %s317 = sand.u32 %s186, 1
        %s318 = scalar_lea.vmem [#allocation11], %s317
        %v319 = vld [vmem:[%s267] sm:$0xff]
        %v320 = vld [vmem:[%s276] sm:$0xff]
        %v321 = vand.u32 2147483647, %v319
        %v322 = vsub.f32 0.0, %v321
        %v323 = vmul.f32 %v322, 1.442695
        %v324 = vpow.pop %v323
        %v325 = vadd.f32 %v324, 1.0
        %v326 = vmax.f32 %v319, 0.0
        %v327 = vmul.f32 %v319, %v320
        %v328 = vsub.f32 %v326, %v327
        %v329 = vlog2.pop %v325
        %v330 = vmul.f32 %v329, 0.6931472
        %v331 = vadd.f32 %v328, %v330
        %v332 = vrcp.pop %v325
        %vm333 = vcmp.ge.f32.partialorder %v319, 0.0
        %v334 = vmul.f32 %v324, %v332
        %v335 = vsel %vm333, %v332, %v334
        %v336 = vrot.slane %v331, 4
        %v337 = vadd.f32 %v331, %v336
        %v338 = vrot.slane %v337, 2
        %v339 = vadd.f32 %v337, %v338
        %v340 = vrot.slane %v339, 1
        %v341 = vadd.f32 %v339, %v340
        %v342 = vmul.f32 %v335, %v320
        %v343 = vrot.slane %v342, 4
        %v344 = vadd.f32 %v342, %v343
        %v345 = vrot.slane %v344, 2
        %v346 = vadd.f32 %v344, %v345
        %v347 = vrot.slane %v346, 1
        %v348 = vadd.f32 %v346, %v347
        %v349 = vrot.slane %v335, 4
        %v350 = vadd.f32 %v335, %v349
        %v351 = vrot.slane %v350, 2
        %v352 = vadd.f32 %v350, %v351
        %v353 = vrot.slane %v352, 1
        %v354 = vadd.f32 %v352, %v353
        %v355 = vrot.slane %v320, 4
        %v356 = vadd.f32 %v320, %v355
        %v357 = vrot.slane %v356, 2
        %v358 = vadd.f32 %v356, %v357
        %v359 = vrot.slane %v358, 1
        %v360 = vadd.f32 %v358, %v359
        %p361 = scmp.eq.s32.totalorder %s37, 0
        // Predicated region
        $region37: #{tpu_custom_call.1} parent=27 // pred_check
          %p362 = pneg %p361
        $region38: #{tpu_custom_call.1} parent=27 // pred_check_branch
          %364 = sbr.rel (%p362) target = $region40
        $region39: #{tpu_custom_call.1} parent=27 // pred_region
          %365 = vst [vmem:[%s300] sm:$0x1] 0.0
          %366 = vst [vmem:[%s306] sm:$0x1] 0.0
          %367 = vst [vmem:[%s312] sm:$0x1] 0.0
          %368 = vst [vmem:[%s318] sm:$0x1] 0.0
        $region40: #{tpu_custom_call.1} parent=27 // pred_fallthru
          _
        %v369 = vld [vmem:[%s300] sm:$0x1]
        %v370 = vadd.f32 %v369, %v341
        %371 = vst [vmem:[%s300] sm:$0x1] %v370
        %v372 = vld [vmem:[%s306] sm:$0x1]
        %v373 = vadd.f32 %v372, %v348
        %374 = vst [vmem:[%s306] sm:$0x1] %v373
        %v375 = vld [vmem:[%s312] sm:$0x1]
        %v376 = vadd.f32 %v375, %v354
        %377 = vst [vmem:[%s312] sm:$0x1] %v376
        %v378 = vld [vmem:[%s318] sm:$0x1]
        %v379 = vadd.f32 %v378, %v360
        %380 = vst [vmem:[%s318] sm:$0x1] %v379
        %s381 = sand.u32 %s108, 1
        %s382 = scalar_lea.sflag [#allocation4], %s381
        %s383 = sand.u32 %s108, 1
        %s384 = scalar_lea.vmem [#allocation7], %s383
        %s385 = sand.u32 %s32, 1
        %s386 = scalar_lea.sflag [#allocation9], %s385
        %s387 = sand.u32 %s134, 1
        %s388 = scalar_lea.vmem [#allocation8], %s387
        %s389 = sand.u32 %s32, 1
        %s390 = scalar_lea.sflag [#allocation9], %s389
        %s391 = sand.u32 %s160, 1
        %s392 = scalar_lea.vmem [#allocation10], %s391
        %s393 = sand.u32 %s186, 1
        %s394 = scalar_lea.sflag [#allocation12], %s393
        %s395 = sand.u32 %s186, 1
        %s396 = scalar_lea.vmem [#allocation11], %s395
        // Predicated region
        $region41: #{tpu_custom_call.1} parent=27 // pred_check
          %p397 = pneg %p118
        $region42: #{tpu_custom_call.1} parent=27 // pred_check_branch
          %399 = sbr.rel (%p397) target = $region44
        $region43: #{tpu_custom_call.1} parent=27 // pred_region
          %s401 = ssub.s32 16, 16
          %402 = vsyncadd %s382, %s401
          %s403 = smul.addr %s36, 16
          %s404 = scalar_lea.hbm %s2, %s403
          %s406 = sshll.u32 %s384, 4
          %s407 = int_to_ptr.vmem [resolvable:$true] %s406
          %409 = dma.vmem_to_hbm [thread:$0]  %s407, 16, %s404, %s382
        $region44: #{tpu_custom_call.1} parent=27 // pred_fallthru
          _
        // Predicated region
        $region45: #{tpu_custom_call.1} parent=27 // pred_check
          %p410 = pneg %p144
        $region46: #{tpu_custom_call.1} parent=27 // pred_check_branch
          %412 = sbr.rel (%p410) target = $region48
        $region47: #{tpu_custom_call.1} parent=27 // pred_region
          %s414 = ssub.s32 16, 16
          %415 = vsyncadd %s386, %s414
          %s416 = smul.addr %s36, 16
          %s417 = scalar_lea.hbm %s3, %s416
          %s419 = sshll.u32 %s388, 4
          %s420 = int_to_ptr.vmem [resolvable:$true] %s419
          %422 = dma.vmem_to_hbm [thread:$0]  %s420, 16, %s417, %s386
        $region48: #{tpu_custom_call.1} parent=27 // pred_fallthru
          _
        // Predicated region
        $region49: #{tpu_custom_call.1} parent=27 // pred_check
          %p423 = pneg %p170
        $region50: #{tpu_custom_call.1} parent=27 // pred_check_branch
          %425 = sbr.rel (%p423) target = $region52
        $region51: #{tpu_custom_call.1} parent=27 // pred_region
          %s427 = ssub.s32 16, 16
          %428 = vsyncadd %s390, %s427
          %s429 = smul.addr %s36, 16
          %s430 = scalar_lea.hbm %s4, %s429
          %s432 = sshll.u32 %s392, 4
          %s433 = int_to_ptr.vmem [resolvable:$true] %s432
          %435 = dma.vmem_to_hbm [thread:$0]  %s433, 16, %s430, %s390
        $region52: #{tpu_custom_call.1} parent=27 // pred_fallthru
          _
        // Predicated region
        $region53: #{tpu_custom_call.1} parent=27 // pred_check
          %p436 = pneg %p196
        $region54: #{tpu_custom_call.1} parent=27 // pred_check_branch
          %438 = sbr.rel (%p436) target = $region56
        $region55: #{tpu_custom_call.1} parent=27 // pred_region
          %s440 = ssub.s32 16, 16
          %441 = vsyncadd %s394, %s440
          %s442 = smul.addr %s36, 16
          %s443 = scalar_lea.hbm %s5, %s442
          %s445 = sshll.u32 %s396, 4
          %s446 = int_to_ptr.vmem [resolvable:$true] %s445
          %448 = dma.vmem_to_hbm [thread:$0]  %s446, 16, %s443, %s394
        $region56: #{tpu_custom_call.1} parent=27 // pred_fallthru
          _
      $region28: #{tpu_custom_call.1} parent=5 // pred_fallthru
        _
      %p449 = scmp.le.s32.totalorder 2, %s27
      // Predicated region
      $region57: #{tpu_custom_call.1} parent=5 // pred_check
        %p450 = pneg %p449
      $region58: #{tpu_custom_call.1} parent=5 // pred_check_branch
        %452 = sbr.rel (%p450) target = $region60
      $region59: #{tpu_custom_call.1} parent=5 // pred_region
        %s453 = ssub.s32 %s27, 2
        // Predicated region
        $region61: #{tpu_custom_call.1} parent=59 // pred_check
          %p454 = pneg %p124
        $region62: #{tpu_custom_call.1} parent=59 // pred_check_branch
          %456 = sbr.rel (%p454) target = $region64
        $region63: #{tpu_custom_call.1} parent=59 // pred_region
          %s457 = sand.u32 %s109, 1
          %s458 = scalar_lea.sflag [#allocation4], %s457
          %s459 = sand.u32 %s109, 1
          %s460 = scalar_lea.vmem [#allocation7], %s459
          %461 = dma.done %s458, 16
        $region64: #{tpu_custom_call.1} parent=59 // pred_fallthru
          _
        // Predicated region
        $region65: #{tpu_custom_call.1} parent=59 // pred_check
          %p462 = pneg %p150
        $region66: #{tpu_custom_call.1} parent=59 // pred_check_branch
          %464 = sbr.rel (%p462) target = $region68
        $region67: #{tpu_custom_call.1} parent=59 // pred_region
          %s465 = sand.u32 %s33, 1
          %s466 = scalar_lea.sflag [#allocation9], %s465
          %s467 = sand.u32 %s135, 1
          %s468 = scalar_lea.vmem [#allocation8], %s467
          %469 = dma.done %s466, 16
        $region68: #{tpu_custom_call.1} parent=59 // pred_fallthru
          _
        // Predicated region
        $region69: #{tpu_custom_call.1} parent=59 // pred_check
          %p470 = pneg %p176
        $region70: #{tpu_custom_call.1} parent=59 // pred_check_branch
          %472 = sbr.rel (%p470) target = $region72
        $region71: #{tpu_custom_call.1} parent=59 // pred_region
          %s473 = sand.u32 %s33, 1
          %s474 = scalar_lea.sflag [#allocation9], %s473
          %s475 = sand.u32 %s161, 1
          %s476 = scalar_lea.vmem [#allocation10], %s475
          %477 = dma.done %s474, 16
        $region72: #{tpu_custom_call.1} parent=59 // pred_fallthru
          _
        // Predicated region
        $region73: #{tpu_custom_call.1} parent=59 // pred_check
          %p478 = pneg %p202
        $region74: #{tpu_custom_call.1} parent=59 // pred_check_branch
          %480 = sbr.rel (%p478) target = $region76
        $region75: #{tpu_custom_call.1} parent=59 // pred_region
          %s481 = sand.u32 %s187, 1
          %s482 = scalar_lea.sflag [#allocation12], %s481
          %s483 = sand.u32 %s187, 1
          %s484 = scalar_lea.vmem [#allocation11], %s483
          %485 = dma.done %s482, 16
        $region76: #{tpu_custom_call.1} parent=59 // pred_fallthru
          _
      $region60: #{tpu_custom_call.1} parent=5 // pred_fallthru
        _
    $region6: #{tpu_custom_call.1} parent=1 // loop_footer
      %s31 = sadd.s32 1, %s27
    $region7: #{tpu_custom_call.1} parent=1 // loop_footer_branch
      %26 = sbr.rel target = $region3
    $region8: #{tpu_custom_call.1} parent=1 // loop_exit
      _
    %486 = vsyncpa [#allocation3], 1
    %s487 = scalar_lea.sflag [#allocation3], 1
    %488 = vsyncpa %s487, 1
    %489 = vsyncpa [#allocation6], 1
    %s490 = scalar_lea.sflag [#allocation6], 1
    %491 = vsyncpa %s490, 1
    %492 = vsyncpa [#allocation4], 1
    %s493 = scalar_lea.sflag [#allocation4], 1
    %494 = vsyncpa %s493, 1
    %495 = vsyncpa [#allocation9], 1
    %s496 = scalar_lea.sflag [#allocation9], 1
    %497 = vsyncpa %s496, 1
    %498 = vsyncpa [#allocation12], 1
    %s499 = scalar_lea.sflag [#allocation12], 1
    %500 = vsyncpa %s499, 1

</llo_original>
